<compile_context>
chip_gen: v6e
topology: v6e:2x2x1
jax: 0.10.0
libtpu: 0.0.40
codegen_flags: <defaults>
</compile_context>

<pallas_src>
import functools

import jax
import jax.numpy as jnp
from jax.experimental import pallas as pl
from jax.experimental.pallas import tpu as pltpu

NEG_SLOPE = 0.01  # PyTorch nn.LeakyReLU default


def _leaky_relu(x):
    return jnp.where(x >= 0, x, NEG_SLOPE * x)


def _round_up(x, m):
    return ((x + m - 1) // m) * m


def _aggregator_bi_kernel(norm_ref, rhs_k_ref, ego_m_ref, u1_m_ref,
                          w2_ref, b1_ref, b2_ref,
                          out_ref, acc_ref, *, d_in):
    k = pl.program_id(1)

    @pl.when(k == 0)
    def _():
        acc_ref[...] = jnp.zeros_like(acc_ref)

    # acc[i_tile] += norm[i_tile, k_tile] @ [ego | ego@W1][k_tile]
    # bf16 operands, f32 accumulation on the MXU.
    acc_ref[...] += jnp.dot(norm_ref[...], rhs_k_ref[...],
                            preferred_element_type=jnp.float32)

    @pl.when(k == pl.num_programs(1) - 1)
    def _():
        acc = acc_ref[...]
        side = acc[:, :d_in]        # norm @ ego
        side_w1 = acc[:, d_in:]     # (norm @ ego) @ W1 == norm @ (ego @ W1)

        ego = ego_m_ref[...]        # f32 row tile of ego
        u1 = u1_m_ref[...]          # f32 row tile of ego @ W1

        sum_emb = _leaky_relu(u1 + side_w1 + b1_ref[...])
        bi_emb = _leaky_relu(
            jnp.dot(ego * side, w2_ref[...], preferred_element_type=jnp.float32)
            + b2_ref[...])

        # message_dropout is applied in eval mode -> identity.
        out_ref[...] = (sum_emb + bi_emb).astype(out_ref.dtype)


def _pick_tiles(n, tm_req, tk_req):
    """Power-of-two tiles (multiples of 128), clamped to the padded problem size."""
    n128 = _round_up(n, 128)

    def clamp(req):
        t = 128
        while t * 2 <= min(req, n128):
            t *= 2
        return t

    tm, tk = clamp(tm_req), clamp(tk_req)
    # Keep >= 2 row tiles so the v7x megacore (2 TensorCores) both get work.
    while tm > 128 and _round_up(n, tm) // tm < 2:
        tm //= 2
    return tm, tk


@functools.partial(jax.jit, static_argnames=("tm", "tk"))
def aggregator_bi(norm_matrix, ego, w1, b1, w2, b2, *, tm=512, tk=512):
    # TODO(synk): torch.sparse.mm has no Pallas sparse equivalent; the sparse
    # normalized adjacency is densified and streamed through the MXU (bf16).
    n, d_in = ego.shape
    d_out = w1.shape[1]
    assert norm_matrix.shape == (n, n)

    tm, tk = _pick_tiles(n, tm, tk)
    n_rows = _round_up(n, tm)   # padded output-row / norm-row extent
    n_cols = _round_up(n, tk)   # padded reduction extent (norm cols / rhs rows)

    f32 = jnp.float32
    ego_f32 = ego.astype(f32)
    u1 = ego_f32 @ w1.astype(f32)                      # [n, d_out] = ego @ W1
    width = d_in + d_out

    # Hot-loop (k-stream) operand, bf16: [ego | ego@W1], rows zero-padded to n_cols.
    rhs = jnp.concatenate([ego_f32, u1], axis=1)       # [n, width]
    rhs_k = jnp.pad(rhs, ((0, n_cols - n), (0, 0))).astype(jnp.bfloat16)

    # Cold (m-stream) operands in f32 (epilogue precision), rows padded to n_rows.
    ego_m = jnp.pad(ego_f32, ((0, n_rows - n), (0, 0)))
    u1_m = jnp.pad(u1, ((0, n_rows - n), (0, 0)))

    # Zero-pad the adjacency so ragged edge tiles never accumulate garbage.
    norm_p = jnp.pad(norm_matrix.astype(f32),
                     ((0, n_rows - n), (0, n_cols - n))).astype(jnp.bfloat16)

    grid = (n_rows // tm, n_cols // tk)

    # VMEM budget (lane-padded, double-buffered inputs/outputs) + 2x headroom;
    # kept well under v7x's 64 MiB physical VMEM.
    lanes = lambda w: _round_up(w, 128)
    vmem_bytes = (
        2 * tm * tk * 2                      # norm tiles (bf16)
        + 2 * tk * lanes(width) * 2          # rhs_k tiles (bf16)
        + 2 * tm * lanes(d_in) * 4           # ego_m tiles
        + 2 * tm * lanes(d_out) * 4          # u1_m tiles
        + 2 * tm * lanes(d_out) * 4          # out tiles
        + tm * lanes(width) * 4              # accumulator scratch
        + (d_in * lanes(d_out) + 2 * lanes(d_out)) * 4
    )
    vmem_limit = int(min(max(2 * vmem_bytes, 32 * 2 ** 20), 48 * 2 ** 20))

    out_p = pl.pallas_call(
        functools.partial(_aggregator_bi_kernel, d_in=d_in),
        out_shape=jax.ShapeDtypeStruct((n_rows, d_out), ego.dtype),
        grid_spec=pltpu.PrefetchScalarGridSpec(
            num_scalar_prefetch=0,
            grid=grid,
            in_specs=[
                pl.BlockSpec((tm, tk), lambda i, k: (i, k)),       # norm tile (bf16)
                pl.BlockSpec((tk, width), lambda i, k: (k, 0)),    # [ego|ego@W1] k rows (bf16)
                pl.BlockSpec((tm, d_in), lambda i, k: (i, 0)),     # ego rows for this out tile (f32)
                pl.BlockSpec((tm, d_out), lambda i, k: (i, 0)),    # ego@W1 rows (f32)
                pl.BlockSpec((d_in, d_out), lambda i, k: (0, 0)),  # W2
                pl.BlockSpec((1, d_out), lambda i, k: (0, 0)),     # b1
                pl.BlockSpec((1, d_out), lambda i, k: (0, 0)),     # b2
            ],
            out_specs=pl.BlockSpec((tm, d_out), lambda i, k: (i, 0)),
            scratch_shapes=[pltpu.VMEM((tm, width), jnp.float32)],
        ),
        compiler_params=pltpu.CompilerParams(
            dimension_semantics=("parallel", "arbitrary"),
            vmem_limit_bytes=vmem_limit),
    )(norm_p, rhs_k, ego_m, u1_m,
      w2.astype(f32), b1.astype(f32), b2.astype(f32))

    return out_p[:n]


def reference_bi(norm_matrix, ego, w1, b1, w2, b2):
    side = norm_matrix @ ego
    sum_emb = jax.nn.leaky_relu((ego + side) @ w1 + b1, NEG_SLOPE)
    bi_emb = jax.nn.leaky_relu((ego * side) @ w2 + b2, NEG_SLOPE)
    return bi_emb + sum_emb


if __name__ == "__main__":
    key = jax.random.PRNGKey(0)
    k_adj, k_ego, k_w1, k_b1, k_w2, k_b2 = jax.random.split(key, 6)

    N = 256        # number of graph nodes (entities + users + items)
    D_IN = 32      # input embedding dim
    D_OUT = 32     # output embedding dim

    # Deterministic sparse-ish normalized adjacency, densified.
    adj_mask = (jax.random.uniform(k_adj, (N, N)) < 0.05).astype(jnp.float32)
    deg = jnp.maximum(adj_mask.sum(axis=1, keepdims=True), 1.0)
    norm_matrix = adj_mask / deg

    ego = jax.random.normal(k_ego, (N, D_IN), dtype=jnp.float32)

    # "Linear" parameters stored as [D_in, D_out] (i.e. W^T of the nn.Linear weight).
    w1 = jax.random.normal(k_w1, (D_IN, D_OUT), dtype=jnp.float32) * 0.1
    b1 = jax.random.normal(k_b1, (1, D_OUT), dtype=jnp.float32) * 0.1
    w2 = jax.random.normal(k_w2, (D_IN, D_OUT), dtype=jnp.float32) * 0.1
    b2 = jax.random.normal(k_b2, (1, D_OUT), dtype=jnp.float32) * 0.1

    out = aggregator_bi(norm_matrix, ego, w1, b1, w2, b2)
    out = jax.block_until_ready(out)

    ref = reference_bi(norm_matrix, ego, w1, b1, w2, b2)
    assert out.shape == (N, D_OUT)
    # bf16 adjacency / spmm-RHS stream (f32 accumulate) -> loosened tolerance vs f32 ref.
    assert jnp.allclose(out, ref, atol=2e-2, rtol=2e-2), "mismatch vs reference"

    print("KERNEL_OK")
</pallas_src>

<mosaic_0001>
module attributes {stable_mosaic.version = 11 : i64} {
  func.func @_aggregator_bi_kernel(%arg0: i32, %arg1: i32, %arg2: memref<128x256xbf16, #tpu.memory_space<vmem>>, %arg3: memref<256x64xbf16, #tpu.memory_space<vmem>>, %arg4: memref<128x32xf32, #tpu.memory_space<vmem>>, %arg5: memref<128x32xf32, #tpu.memory_space<vmem>>, %arg6: memref<32x32xf32, #tpu.memory_space<vmem>>, %arg7: memref<1x32xf32, #tpu.memory_space<vmem>>, %arg8: memref<1x32xf32, #tpu.memory_space<vmem>>, %arg9: memref<128x32xf32, #tpu.memory_space<vmem>>, %arg10: memref<128x64xf32, #tpu.memory_space<vmem>>) attributes {dimension_semantics = [#tpu.dimension_semantics<parallel>, #tpu.dimension_semantics<arbitrary>], iteration_bounds = array<i64: 2, 1>, scalar_prefetch = 0 : i64, scratch_operands = 1 : i64, tpu.core_type = #tpu.core_type<tc>, window_params = [{transform_indices = @transform_0, window_bounds = array<i64: 128, 256>}, {transform_indices = @transform_1, window_bounds = array<i64: 256, 64>}, {transform_indices = @transform_2, window_bounds = array<i64: 128, 32>}, {transform_indices = @transform_3, window_bounds = array<i64: 128, 32>}, {pipeline_mode = #tpu.pipeline_mode<synchronous>, transform_indices = @transform_4, window_bounds = array<i64: 32, 32>}, {pipeline_mode = #tpu.pipeline_mode<synchronous>, transform_indices = @transform_5, window_bounds = array<i64: 1, 32>}, {pipeline_mode = #tpu.pipeline_mode<synchronous>, transform_indices = @transform_6, window_bounds = array<i64: 1, 32>}, {transform_indices = @transform_7, window_bounds = array<i64: 128, 32>}]} {
    %c0_i32 = arith.constant 0 : i32
    %0 = arith.cmpi eq, %arg1, %c0_i32 : i32
    %1 = arith.extui %0 : i1 to i32
    %c0_i32_0 = arith.constant 0 : i32
    %2 = arith.cmpi ne, %1, %c0_i32_0 : i32
    scf.if %2 {
      %cst_10 = arith.constant 0.000000e+00 : f32
      %12 = vector.broadcast %cst_10 : f32 to vector<128x64xf32>
      %c0_11 = arith.constant 0 : index
      %c0_12 = arith.constant 0 : index
      %13 = vector.load %arg10[%c0_11, %c0_12] : memref<128x64xf32, #tpu.memory_space<vmem>>, vector<128x64xf32>
      tpu.vector_store %arg10[%c0_11, %c0_12], %12 {strides = array<i32>} : memref<128x64xf32, #tpu.memory_space<vmem>>, vector<128x64xf32>,
    } else {
    }
    %c0 = arith.constant 0 : index
    %c0_1 = arith.constant 0 : index
    %3 = vector.load %arg10[%c0, %c0_1] : memref<128x64xf32, #tpu.memory_space<vmem>>, vector<128x64xf32>
    %c0_2 = arith.constant 0 : index
    %c0_3 = arith.constant 0 : index
    %4 = vector.load %arg2[%c0_2, %c0_3] : memref<128x256xbf16, #tpu.memory_space<vmem>>, vector<128x256xbf16>
    %c0_4 = arith.constant 0 : index
    %c0_5 = arith.constant 0 : index
    %5 = vector.load %arg3[%c0_4, %c0_5] : memref<256x64xbf16, #tpu.memory_space<vmem>>, vector<256x64xbf16>
    %cst = arith.constant dense<0.000000e+00> : vector<128x64xf32>
    %6 = tpu.matmul %4, %5, %cst {dimension_numbers = #tpu.dot_dimension_numbers<[1], [0], [0], [1], [0, 0, 1, 1], [], []>} : vector<128x256xbf16>, vector<256x64xbf16>, vector<128x64xf32> -> vector<128x64xf32>
    %7 = arith.addf %3, %6 : vector<128x64xf32>
    %c0_6 = arith.constant 0 : index
    %c0_7 = arith.constant 0 : index
    %8 = vector.load %arg10[%c0_6, %c0_7] : memref<128x64xf32, #tpu.memory_space<vmem>>, vector<128x64xf32>
    tpu.vector_store %arg10[%c0_6, %c0_7], %7 {strides = array<i32>} : memref<128x64xf32, #tpu.memory_space<vmem>>, vector<128x64xf32>,
    %c0_i32_8 = arith.constant 0 : i32
    %9 = arith.cmpi eq, %arg1, %c0_i32_8 : i32
    %10 = arith.extui %9 : i1 to i32
    %c0_i32_9 = arith.constant 0 : i32
    %11 = arith.cmpi ne, %10, %c0_i32_9 : i32
    scf.if %11 {
      %c0_10 = arith.constant 0 : index
      %c0_11 = arith.constant 0 : index
      %12 = vector.load %arg10[%c0_10, %c0_11] : memref<128x64xf32, #tpu.memory_space<vmem>>, vector<128x64xf32>
      %13 = vector.extract_strided_slice %12 {offsets = [0, 0], sizes = [128, 32], strides = [1, 1]} : vector<128x64xf32> to vector<128x32xf32>
      %14 = vector.extract_strided_slice %12 {offsets = [0, 32], sizes = [128, 32], strides = [1, 1]} : vector<128x64xf32> to vector<128x32xf32>
      %c0_12 = arith.constant 0 : index
      %c0_13 = arith.constant 0 : index
      %15 = vector.load %arg4[%c0_12, %c0_13] : memref<128x32xf32, #tpu.memory_space<vmem>>, vector<128x32xf32>
      %c0_14 = arith.constant 0 : index
      %c0_15 = arith.constant 0 : index
      %16 = vector.load %arg5[%c0_14, %c0_15] : memref<128x32xf32, #tpu.memory_space<vmem>>, vector<128x32xf32>
      %17 = arith.addf %16, %14 : vector<128x32xf32>
      %c0_16 = arith.constant 0 : index
      %c0_17 = arith.constant 0 : index
      %18 = vector.load %arg7[%c0_16, %c0_17] : memref<1x32xf32, #tpu.memory_space<vmem>>, vector<1x32xf32>
      %19 = vector.broadcast %18 : vector<1x32xf32> to vector<128x32xf32>
      %20 = arith.addf %17, %19 : vector<128x32xf32>
      %cst_18 = arith.constant 0.000000e+00 : f32
      %21 = vector.broadcast %cst_18 : f32 to vector<128x32xf32>
      %22 = arith.cmpf oge, %20, %21 : vector<128x32xf32>
      %cst_19 = arith.constant 0.00999999977 : f32
      %23 = vector.broadcast %cst_19 : f32 to vector<128x32xf32>
      %24 = arith.mulf %23, %20 : vector<128x32xf32>
      %25 = arith.select %22, %20, %24 : vector<128x32xi1>, vector<128x32xf32>
      %26 = arith.mulf %15, %13 : vector<128x32xf32>
      %c0_20 = arith.constant 0 : index
      %c0_21 = arith.constant 0 : index
      %27 = vector.load %arg6[%c0_20, %c0_21] : memref<32x32xf32, #tpu.memory_space<vmem>>, vector<32x32xf32>
      %cst_22 = arith.constant dense<0.000000e+00> : vector<128x32xf32>
      %28 = tpu.matmul %26, %27, %cst_22 {dimension_numbers = #tpu.dot_dimension_numbers<[1], [0], [0], [1], [0, 0, 1, 1], [], []>} : vector<128x32xf32>, vector<32x32xf32>, vector<128x32xf32> -> vector<128x32xf32>
      %c0_23 = arith.constant 0 : index
      %c0_24 = arith.constant 0 : index
      %29 = vector.load %arg8[%c0_23, %c0_24] : memref<1x32xf32, #tpu.memory_space<vmem>>, vector<1x32xf32>
      %30 = vector.broadcast %29 : vector<1x32xf32> to vector<128x32xf32>
      %31 = arith.addf %28, %30 : vector<128x32xf32>
      %cst_25 = arith.constant 0.000000e+00 : f32
      %32 = vector.broadcast %cst_25 : f32 to vector<128x32xf32>
      %33 = arith.cmpf oge, %31, %32 : vector<128x32xf32>
      %cst_26 = arith.constant 0.00999999977 : f32
      %34 = vector.broadcast %cst_26 : f32 to vector<128x32xf32>
      %35 = arith.mulf %34, %31 : vector<128x32xf32>
      %36 = arith.select %33, %31, %35 : vector<128x32xi1>, vector<128x32xf32>
      %37 = arith.addf %25, %36 : vector<128x32xf32>
      %c0_27 = arith.constant 0 : index
      %c0_28 = arith.constant 0 : index
      %38 = vector.load %arg9[%c0_27, %c0_28] : memref<128x32xf32, #tpu.memory_space<vmem>>, vector<128x32xf32>
      tpu.vector_store %arg9[%c0_27, %c0_28], %37 {strides = array<i32>} : memref<128x32xf32, #tpu.memory_space<vmem>>, vector<128x32xf32>,
    } else {
    }
    return
  }
  func.func @transform_0(%arg0: i32, %arg1: i32) -> (i32, i32) {
    %c0_i32 = arith.constant 0 : i32
    return %arg0, %arg1 : i32, i32
  }
  func.func @transform_1(%arg0: i32, %arg1: i32) -> (i32, i32) {
    %c0_i32 = arith.constant 0 : i32
    %c0_i32_0 = arith.constant 0 : i32
    return %arg1, %c0_i32 : i32, i32
  }
  func.func @transform_2(%arg0: i32, %arg1: i32) -> (i32, i32) {
    %c0_i32 = arith.constant 0 : i32
    %c0_i32_0 = arith.constant 0 : i32
    return %arg0, %c0_i32 : i32, i32
  }
  func.func @transform_3(%arg0: i32, %arg1: i32) -> (i32, i32) {
    %c0_i32 = arith.constant 0 : i32
    %c0_i32_0 = arith.constant 0 : i32
    return %arg0, %c0_i32 : i32, i32
  }
  func.func @transform_4(%arg0: i32, %arg1: i32) -> (i32, i32) {
    %c0_i32 = arith.constant 0 : i32
    %c0_i32_0 = arith.constant 0 : i32
    %c0_i32_1 = arith.constant 0 : i32
    return %c0_i32, %c0_i32_0 : i32, i32
  }
  func.func @transform_5(%arg0: i32, %arg1: i32) -> (i32, i32) {
    %c0_i32 = arith.constant 0 : i32
    %c0_i32_0 = arith.constant 0 : i32
    %c0_i32_1 = arith.constant 0 : i32
    return %c0_i32, %c0_i32_0 : i32, i32
  }
  func.func @transform_6(%arg0: i32, %arg1: i32) -> (i32, i32) {
    %c0_i32 = arith.constant 0 : i32
    %c0_i32_0 = arith.constant 0 : i32
    %c0_i32_1 = arith.constant 0 : i32
    return %c0_i32, %c0_i32_0 : i32, i32
  }
  func.func @transform_7(%arg0: i32, %arg1: i32) -> (i32, i32) {
    %c0_i32 = arith.constant 0 : i32
    %c0_i32_0 = arith.constant 0 : i32
    return %arg0, %c0_i32 : i32, i32
  }
}

</mosaic_0001>

<llo_original>
// kernel: aggregator_bi.1
$region0: #{aggregator_bi.1}
  #allocation0 [shape = 'u32[]', space=smem, size = 0x4, offset = 0x4, fixed_abs, tag = 'smem constant byte address 0x4 - core index']
  #allocation1 [shape = 'u32[144,128]{1,0:T(1,128)}', space=vmem, size = 0x12000, scoped, tag = 'internal scratch']
  #allocation2 [shape = 'f32[128,64]{1,0:T(8,128)}', space=vmem, size = 0x10000, scoped, tag = 'scratch operand']
  %s0 = inlined_call_operand.vmem [shape: bf16[256,256], index: 0, kind: input, shape index: {}]
  %s1 = inlined_call_operand.vmem [shape: bf16[256,64], index: 1, kind: input, shape index: {}]
  %s2 = inlined_call_operand.vmem [shape: f32[256,32], index: 2, kind: input, shape index: {}]
  %s3 = inlined_call_operand.vmem [shape: f32[256,32], index: 3, kind: input, shape index: {}]
  %s4 = inlined_call_operand.vmem [shape: f32[32,32], index: 4, kind: input, shape index: {}]
  %s5 = inlined_call_operand.vmem [shape: f32[1,32], index: 5, kind: input, shape index: {}]
  %s6 = inlined_call_operand.vmem [shape: f32[1,32], index: 6, kind: input, shape index: {}]
  %s7 = inlined_call_operand.vmem [shape: f32[256,32], index: 7, kind: output, shape index: {}]
  %s8 = sld [smem:[#allocation0]]
  $region69: #{aggregator_bi.1} parent=0
    _
  %s10 = ssub.s32 1, %s8
  %s11 = scalar_select 0, %s10, %s8
  loop: start=0, step=1, limit=4
  $region2: #{aggregator_bi.1} parent=0 // loop_pre_header
    _
  $region3: #{aggregator_bi.1} parent=0 // loop_header
    %s13 = sphi 0, %s17
    %p14 = scmp.ge.s32.totalorder %s13, 4
    %s20 = sphi 0, %s32
    %s21 = sphi 0, %s28
    %s22 = sphi 0, %s20
    %s23 = sphi 0, %s21
    %s24 = sphi 0, %s22
    %s25 = sphi 0, %s23
    %s37 = sphi 0, %s39
    %s40 = sphi 0, %s37
    %s41 = sphi 0, %s40
    %s57 = sphi 0, %s41
    %s63 = sphi 0, %s65
    %s66 = sphi 0, %s63
    %s67 = sphi 0, %s66
    %s83 = sphi 0, %s67
    %s89 = sphi 0, %s91
    %s92 = sphi 0, %s89
    %s93 = sphi 0, %s92
    %s109 = sphi 0, %s93
    %s115 = sphi 0, %s117
    %s118 = sphi 0, %s115
    %s119 = sphi 0, %s118
    %s135 = sphi 0, %s119
    %s139 = sphi 0, %s139
    %s141 = sphi 0, %s139
    %s142 = sphi 0, %s141
    %s156 = sphi 0, %s142
    %s160 = sphi 0, %s160
    %s162 = sphi 0, %s160
    %s163 = sphi 0, %s162
    %s177 = sphi 0, %s163
    %s181 = sphi 0, %s181
    %s183 = sphi 0, %s181
    %s184 = sphi 0, %s183
    %s198 = sphi 0, %s184
    %s204 = sphi 0, %s206
    %s207 = sphi 0, %s204
    %s208 = sphi 0, %s207
    %s224 = sphi 0, %s208
  $region4: #{aggregator_bi.1} parent=0 // loop_header_branch
    %16 = sbr.rel (%p14) target = $region8
  $region5: #{aggregator_bi.1} parent=0 // loop_body
    %s18 = ssub.s32 %s13, 1
    %s19 = ssub.s32 %s13, 2
    %s26 = sadd.s32 1, %s21
    %p27 = scmp.ge.s32.totalorder %s26, 1
    %s28 = scalar_select %p27, 0, %s26
    %s29 = sadd.s32 1, %s20
    %s30 = scalar_select %p27, %s29, %s20
    %p31 = scmp.ge.s32.totalorder %s30, 2
    %s32 = scalar_select %p31, 0, %s30
    %s33 = ssub.s32 %s20, %s32
    %s34 = ssub.s32 %s21, %s28
    %s35 = sor.u32 %s33, %s34
    %p36 = scmp.eq.s32.totalorder %s35, 0
    %s38 = sadd.s32 %s37, 1
    %s39 = scalar_select %p36, %s37, %s38
    %p42 = pneg %p36
    %p43 = scmp.eq.s32.totalorder %s13, 1
    %p44 = por %p42, %p43
    %p45 = scmp.ne.s32.totalorder %s37, %s40
    %p46 = scmp.eq.s32.totalorder %s13, 0
    %p47 = por %p45, %p46
    %p48 = scmp.ne.s32.totalorder %s37, %s40
    %p49 = scmp.eq.s32.totalorder %s18, 1
    %p50 = por %p48, %p49
    %p51 = scmp.ne.s32.totalorder %s40, %s41
    %p52 = scmp.eq.s32.totalorder %s18, 0
    %p53 = por %p51, %p52
    %p54 = scmp.ne.s32.totalorder %s40, %s41
    %p55 = scmp.eq.s32.totalorder %s19, 1
    %p56 = por %p54, %p55
    %p58 = scmp.ne.s32.totalorder %s41, %s57
    %p59 = scmp.eq.s32.totalorder %s19, 0
    %p60 = por %p58, %p59
    %s61 = ssub.s32 %s21, %s28
    %p62 = scmp.eq.s32.totalorder %s61, 0
    %s64 = sadd.s32 %s63, 1
    %s65 = scalar_select %p62, %s63, %s64
    %p68 = pneg %p62
    %p69 = scmp.eq.s32.totalorder %s13, 1
    %p70 = por %p68, %p69
    %p71 = scmp.ne.s32.totalorder %s63, %s66
    %p72 = scmp.eq.s32.totalorder %s13, 0
    %p73 = por %p71, %p72
    %p74 = scmp.ne.s32.totalorder %s63, %s66
    %p75 = scmp.eq.s32.totalorder %s18, 1
    %p76 = por %p74, %p75
    %p77 = scmp.ne.s32.totalorder %s66, %s67
    %p78 = scmp.eq.s32.totalorder %s18, 0
    %p79 = por %p77, %p78
    %p80 = scmp.ne.s32.totalorder %s66, %s67
    %p81 = scmp.eq.s32.totalorder %s19, 1
    %p82 = por %p80, %p81
    %p84 = scmp.ne.s32.totalorder %s67, %s83
    %p85 = scmp.eq.s32.totalorder %s19, 0
    %p86 = por %p84, %p85
    %s87 = ssub.s32 %s20, %s32
    %p88 = scmp.eq.s32.totalorder %s87, 0
    %s90 = sadd.s32 %s89, 1
    %s91 = scalar_select %p88, %s89, %s90
    %p94 = pneg %p88
    %p95 = scmp.eq.s32.totalorder %s13, 1
    %p96 = por %p94, %p95
    %p97 = scmp.ne.s32.totalorder %s89, %s92
    %p98 = scmp.eq.s32.totalorder %s13, 0
    %p99 = por %p97, %p98
    %p100 = scmp.ne.s32.totalorder %s89, %s92
    %p101 = scmp.eq.s32.totalorder %s18, 1
    %p102 = por %p100, %p101
    %p103 = scmp.ne.s32.totalorder %s92, %s93
    %p104 = scmp.eq.s32.totalorder %s18, 0
    %p105 = por %p103, %p104
    %p106 = scmp.ne.s32.totalorder %s92, %s93
    %p107 = scmp.eq.s32.totalorder %s19, 1
    %p108 = por %p106, %p107
    %p110 = scmp.ne.s32.totalorder %s93, %s109
    %p111 = scmp.eq.s32.totalorder %s19, 0
    %p112 = por %p110, %p111
    %s113 = ssub.s32 %s20, %s32
    %p114 = scmp.eq.s32.totalorder %s113, 0
    %s116 = sadd.s32 %s115, 1
    %s117 = scalar_select %p114, %s115, %s116
    %p120 = pneg %p114
    %p121 = scmp.eq.s32.totalorder %s13, 1
    %p122 = por %p120, %p121
    %p123 = scmp.ne.s32.totalorder %s115, %s118
    %p124 = scmp.eq.s32.totalorder %s13, 0
    %p125 = por %p123, %p124
    %p126 = scmp.ne.s32.totalorder %s115, %s118
    %p127 = scmp.eq.s32.totalorder %s18, 1
    %p128 = por %p126, %p127
    %p129 = scmp.ne.s32.totalorder %s118, %s119
    %p130 = scmp.eq.s32.totalorder %s18, 0
    %p131 = por %p129, %p130
    %p132 = scmp.ne.s32.totalorder %s118, %s119
    %p133 = scmp.eq.s32.totalorder %s19, 1
    %p134 = por %p132, %p133
    %p136 = scmp.ne.s32.totalorder %s119, %s135
    %p137 = scmp.eq.s32.totalorder %s19, 0
    %p138 = por %p136, %p137
    %s140 = sadd.s32 %s139, 1
    %p143 = scmp.eq.s32.totalorder %s13, 1
    %p144 = scmp.ne.s32.totalorder %s139, %s141
    %p145 = scmp.eq.s32.totalorder %s13, 0
    %p146 = por %p144, %p145
    %p147 = scmp.ne.s32.totalorder %s139, %s141
    %p148 = scmp.eq.s32.totalorder %s18, 1
    %p149 = por %p147, %p148
    %p150 = scmp.ne.s32.totalorder %s141, %s142
    %p151 = scmp.eq.s32.totalorder %s18, 0
    %p152 = por %p150, %p151
    %p153 = scmp.ne.s32.totalorder %s141, %s142
    %p154 = scmp.eq.s32.totalorder %s19, 1
    %p155 = por %p153, %p154
    %p157 = scmp.ne.s32.totalorder %s142, %s156
    %p158 = scmp.eq.s32.totalorder %s19, 0
    %p159 = por %p157, %p158
    %s161 = sadd.s32 %s160, 1
    %p164 = scmp.eq.s32.totalorder %s13, 1
    %p165 = scmp.ne.s32.totalorder %s160, %s162
    %p166 = scmp.eq.s32.totalorder %s13, 0
    %p167 = por %p165, %p166
    %p168 = scmp.ne.s32.totalorder %s160, %s162
    %p169 = scmp.eq.s32.totalorder %s18, 1
    %p170 = por %p168, %p169
    %p171 = scmp.ne.s32.totalorder %s162, %s163
    %p172 = scmp.eq.s32.totalorder %s18, 0
    %p173 = por %p171, %p172
    %p174 = scmp.ne.s32.totalorder %s162, %s163
    %p175 = scmp.eq.s32.totalorder %s19, 1
    %p176 = por %p174, %p175
    %p178 = scmp.ne.s32.totalorder %s163, %s177
    %p179 = scmp.eq.s32.totalorder %s19, 0
    %p180 = por %p178, %p179
    %s182 = sadd.s32 %s181, 1
    %p185 = scmp.eq.s32.totalorder %s13, 1
    %p186 = scmp.ne.s32.totalorder %s181, %s183
    %p187 = scmp.eq.s32.totalorder %s13, 0
    %p188 = por %p186, %p187
    %p189 = scmp.ne.s32.totalorder %s181, %s183
    %p190 = scmp.eq.s32.totalorder %s18, 1
    %p191 = por %p189, %p190
    %p192 = scmp.ne.s32.totalorder %s183, %s184
    %p193 = scmp.eq.s32.totalorder %s18, 0
    %p194 = por %p192, %p193
    %p195 = scmp.ne.s32.totalorder %s183, %s184
    %p196 = scmp.eq.s32.totalorder %s19, 1
    %p197 = por %p195, %p196
    %p199 = scmp.ne.s32.totalorder %s184, %s198
    %p200 = scmp.eq.s32.totalorder %s19, 0
    %p201 = por %p199, %p200
    %s202 = ssub.s32 %s20, %s32
    %p203 = scmp.eq.s32.totalorder %s202, 0
    %s205 = sadd.s32 %s204, 1
    %s206 = scalar_select %p203, %s204, %s205
    %p209 = pneg %p203
    %p210 = scmp.eq.s32.totalorder %s13, 1
    %p211 = por %p209, %p210
    %p212 = scmp.ne.s32.totalorder %s204, %s207
    %p213 = scmp.eq.s32.totalorder %s13, 0
    %p214 = por %p212, %p213
    %p215 = scmp.ne.s32.totalorder %s204, %s207
    %p216 = scmp.eq.s32.totalorder %s18, 1
    %p217 = por %p215, %p216
    %p218 = scmp.ne.s32.totalorder %s207, %s208
    %p219 = scmp.eq.s32.totalorder %s18, 0
    %p220 = por %p218, %p219
    %p221 = scmp.ne.s32.totalorder %s207, %s208
    %p222 = scmp.eq.s32.totalorder %s19, 1
    %p223 = por %p221, %p222
    %p225 = scmp.ne.s32.totalorder %s208, %s224
    %p226 = scmp.eq.s32.totalorder %s19, 0
    %p227 = por %p225, %p226
    %p228 = scmp.le.s32.totalorder 1, %s13
    %p229 = scmp.lt.s32.totalorder %s13, 3
    %p230 = pnand %p228, %p229
    %p231 = pneg %p230
    // Predicated region
    $region9: #{aggregator_bi.1} parent=5 // pred_check
      _
    $region10: #{aggregator_bi.1} parent=5 // pred_check_branch
      %233 = sbr.rel (%p230) target = $region12
    $region11: #{aggregator_bi.1} parent=5 // pred_region
      %s234 = ssub.s32 %s13, 1
      // Predicated region
      $region13: #{aggregator_bi.1} parent=11 // pred_check
        %p235 = pneg %p79
      $region14: #{aggregator_bi.1} parent=11 // pred_check_branch
        %237 = sbr.rel (%p235) target = $region16
      $region15: #{aggregator_bi.1} parent=11 // pred_region
        %s238 = smul.u32 32, %s23
        %p239 = scmp.lt.s32.totalorder %s238, 31
        %s240 = scalar_select %p239, %s238, 31
        %s241 = smul.addr %s240, 4
        %s242 = scalar_lea.vmem %s1, %s241
        %s243 = smul.u32 32, %s23
      $region16: #{aggregator_bi.1} parent=11 // pred_fallthru
        _
      // Predicated region
      $region17: #{aggregator_bi.1} parent=11 // pred_check
        %p244 = pneg %p152
      $region18: #{aggregator_bi.1} parent=11 // pred_check_branch
        %246 = sbr.rel (%p244) target = $region20
      $region19: #{aggregator_bi.1} parent=11 // pred_region
        _
      $region20: #{aggregator_bi.1} parent=11 // pred_fallthru
        _
      // Predicated region
      $region21: #{aggregator_bi.1} parent=11 // pred_check
        %p247 = pneg %p173
      $region22: #{aggregator_bi.1} parent=11 // pred_check_branch
        %249 = sbr.rel (%p247) target = $region24
      $region23: #{aggregator_bi.1} parent=11 // pred_region
        _
      $region24: #{aggregator_bi.1} parent=11 // pred_fallthru
        _
      // Predicated region
      $region25: #{aggregator_bi.1} parent=11 // pred_check
        %p250 = pneg %p194
      $region26: #{aggregator_bi.1} parent=11 // pred_check_branch
        %252 = sbr.rel (%p250) target = $region28
      $region27: #{aggregator_bi.1} parent=11 // pred_region
        _
      $region28: #{aggregator_bi.1} parent=11 // pred_fallthru
        _
    $region12: #{aggregator_bi.1} parent=5 // pred_fallthru
      _
    %p253 = scmp.lt.s32.totalorder %s13, 2
    // Predicated region
    $region29: #{aggregator_bi.1} parent=5 // pred_check
      %p254 = pneg %p253
    $region30: #{aggregator_bi.1} parent=5 // pred_check_branch
      %256 = sbr.rel (%p254) target = $region32
    $region31: #{aggregator_bi.1} parent=5 // pred_region
      // Predicated region
      $region33: #{aggregator_bi.1} parent=31 // pred_check
        %p257 = pneg %p47
      $region34: #{aggregator_bi.1} parent=31 // pred_check_branch
        %259 = sbr.rel (%p257) target = $region36
      $region35: #{aggregator_bi.1} parent=31 // pred_region
        %s260 = smul.u32 16, %s20
        %s261 = smul.u32 2, %s21
        %p262 = scmp.lt.s32.totalorder %s260, 31
        %s263 = scalar_select %p262, %s260, 31
        %p264 = scmp.lt.s32.totalorder %s261, 1
        %s265 = scalar_select %p264, %s261, 1
        %s266 = smul.addr %s263, 2
        %s267 = sadd.s32 %s265, %s266
        %s268 = smul.addr %s267, 4
        %s269 = scalar_lea.vmem %s0, %s268
        %s270 = smul.u32 16, %s20
        %s271 = smul.u32 2, %s21
      $region36: #{aggregator_bi.1} parent=31 // pred_fallthru
        _
      // Predicated region
      $region37: #{aggregator_bi.1} parent=31 // pred_check
        %p272 = pneg %p99
      $region38: #{aggregator_bi.1} parent=31 // pred_check_branch
        %274 = sbr.rel (%p272) target = $region40
      $region39: #{aggregator_bi.1} parent=31 // pred_region
        %s275 = smul.u32 16, %s20
        %p276 = scmp.lt.s32.totalorder %s275, 31
        %s277 = scalar_select %p276, %s275, 31
        %s278 = smul.addr %s277, 8
        %s279 = scalar_lea.vmem %s2, %s278
        %s280 = smul.u32 16, %s20
      $region40: #{aggregator_bi.1} parent=31 // pred_fallthru
        _
      // Predicated region
      $region41: #{aggregator_bi.1} parent=31 // pred_check
        %p281 = pneg %p125
      $region42: #{aggregator_bi.1} parent=31 // pred_check_branch
        %283 = sbr.rel (%p281) target = $region44
      $region43: #{aggregator_bi.1} parent=31 // pred_region
        %s284 = smul.u32 16, %s20
        %p285 = scmp.lt.s32.totalorder %s284, 31
        %s286 = scalar_select %p285, %s284, 31
        %s287 = smul.addr %s286, 8
        %s288 = scalar_lea.vmem %s3, %s287
        %s289 = smul.u32 16, %s20
      $region44: #{aggregator_bi.1} parent=31 // pred_fallthru
        _
    $region32: #{aggregator_bi.1} parent=5 // pred_fallthru
      _
    %p290 = scmp.le.s32.totalorder 1, %s13
    %p291 = scmp.lt.s32.totalorder %s13, 3
    %p292 = pnand %p290, %p291
    %p293 = pneg %p292
    // Predicated region
    $region45: #{aggregator_bi.1} parent=5 // pred_check
      _
    $region46: #{aggregator_bi.1} parent=5 // pred_check_branch
      %295 = sbr.rel (%p292) target = $region48
    $region47: #{aggregator_bi.1} parent=5 // pred_region
      %s296 = ssub.s32 %s13, 1
      %s297 = smul.u32 16, %s22
      %s298 = smul.u32 2, %s23
      %p299 = scmp.lt.s32.totalorder %s297, 31
      %s300 = scalar_select %p299, %s297, 31
      %p301 = scmp.lt.s32.totalorder %s298, 1
      %s302 = scalar_select %p301, %s298, 1
      %s303 = smul.addr %s300, 2
      %s304 = sadd.s32 %s302, %s303
      %s305 = smul.addr %s304, 4
      %s306 = scalar_lea.vmem %s0, %s305
      %p307 = pneg %p53
      %p308 = pneg %p50
      %s309 = smul.u32 32, %s23
      %p310 = scmp.lt.s32.totalorder %s309, 31
      %s311 = scalar_select %p310, %s309, 31
      %s312 = smul.addr %s311, 4
      %s313 = scalar_lea.vmem %s1, %s312
      %p314 = pneg %p79
      %p315 = pneg %p76
      %s316 = smul.u32 16, %s22
      %p317 = scmp.lt.s32.totalorder %s316, 31
      %s318 = scalar_select %p317, %s316, 31
      %s319 = smul.addr %s318, 8
      %s320 = scalar_lea.vmem %s2, %s319
      %p321 = pneg %p105
      %p322 = pneg %p102
      %s323 = smul.u32 16, %s22
      %p324 = scmp.lt.s32.totalorder %s323, 31
      %s325 = scalar_select %p324, %s323, 31
      %s326 = smul.addr %s325, 8
      %s327 = scalar_lea.vmem %s3, %s326
      %p328 = pneg %p131
      %p329 = pneg %p128
      %p330 = pneg %p152
      %p331 = pneg %p149
      %p332 = pneg %p173
      %p333 = pneg %p170
      %p334 = pneg %p194
      %p335 = pneg %p191
      %p336 = pneg %p220
      %p337 = pneg %p217
      %s338 = smul.u32 16, %s22
      %p339 = scmp.lt.s32.totalorder %s338, 31
      %s340 = scalar_select %p339, %s338, 31
      %s341 = smul.addr %s340, 8
      %s342 = scalar_lea.vmem %s7, %s341
      %s343 = smul.u32 16, %s22
      %s344 = smul.u32 2, %s23
      %p345 = scmp.lt.s32.totalorder %s343, 31
      %s346 = scalar_select %p345, %s343, 31
      %p347 = scmp.lt.s32.totalorder %s344, 1
      %s348 = scalar_select %p347, %s344, 1
      %s349 = smul.addr %s346, 2
      %s350 = sadd.s32 %s348, %s349
      %s351 = smul.addr %s350, 4
      %s352 = scalar_lea.vmem %s0, %s351
      %s353 = smul.u32 16, %s22
      %s354 = smul.u32 2, %s23
      %s355 = smul.u32 32, %s23
      %p356 = scmp.lt.s32.totalorder %s355, 31
      %s357 = scalar_select %p356, %s355, 31
      %s358 = smul.addr %s357, 4
      %s359 = scalar_lea.vmem %s1, %s358
      %s360 = smul.u32 32, %s23
      %s361 = smul.u32 16, %s22
      %p362 = scmp.lt.s32.totalorder %s361, 31
      %s363 = scalar_select %p362, %s361, 31
      %s364 = smul.addr %s363, 8
      %s365 = scalar_lea.vmem %s2, %s364
      %s366 = smul.u32 16, %s22
      %s367 = smul.u32 16, %s22
      %p368 = scmp.lt.s32.totalorder %s367, 31
      %s369 = scalar_select %p368, %s367, 31
      %s370 = smul.addr %s369, 8
      %s371 = scalar_lea.vmem %s3, %s370
      %s372 = smul.u32 16, %s22
      %s373 = smul.u32 16, %s22
      %p374 = scmp.lt.s32.totalorder %s373, 31
      %s375 = scalar_select %p374, %s373, 31
      %s376 = smul.addr %s375, 8
      %s377 = scalar_lea.vmem %s7, %s376
      %s378 = smul.u32 16, %s22
      %p380 = scmp.eq.s32.totalorder %s23, 0
      // Predicated region
      $region49: #{aggregator_bi.1} parent=47 // pred_check
        %p381 = pneg %p380
      $region50: #{aggregator_bi.1} parent=47 // pred_check_branch
        %383 = sbr.rel (%p381) target = $region52
      $region51: #{aggregator_bi.1} parent=47 // pred_region
        %vm384 = vcmask 523264
        %385 = vst.msk [vmem:[#allocation2] sm:$0xff] %vm384, 0.0
        %386 = vst.msk [vmem:[#allocation2 + $0x8] sm:$0xff] %vm384, 0.0
        %387 = vst.msk [vmem:[#allocation2 + $0x10] sm:$0xff] %vm384, 0.0
        %388 = vst.msk [vmem:[#allocation2 + $0x18] sm:$0xff] %vm384, 0.0
        %389 = vst.msk [vmem:[#allocation2 + $0x20] sm:$0xff] %vm384, 0.0
        %390 = vst.msk [vmem:[#allocation2 + $0x28] sm:$0xff] %vm384, 0.0
        %391 = vst.msk [vmem:[#allocation2 + $0x30] sm:$0xff] %vm384, 0.0
        %392 = vst.msk [vmem:[#allocation2 + $0x38] sm:$0xff] %vm384, 0.0
        %393 = vst.msk [vmem:[#allocation2 + $0x40] sm:$0xff] %vm384, 0.0
        %394 = vst.msk [vmem:[#allocation2 + $0x48] sm:$0xff] %vm384, 0.0
        %395 = vst.msk [vmem:[#allocation2 + $0x50] sm:$0xff] %vm384, 0.0
        %396 = vst.msk [vmem:[#allocation2 + $0x58] sm:$0xff] %vm384, 0.0
        %397 = vst.msk [vmem:[#allocation2 + $0x60] sm:$0xff] %vm384, 0.0
        %398 = vst.msk [vmem:[#allocation2 + $0x68] sm:$0xff] %vm384, 0.0
        %399 = vst.msk [vmem:[#allocation2 + $0x70] sm:$0xff] %vm384, 0.0
        %400 = vst.msk [vmem:[#allocation2 + $0x78] sm:$0xff] %vm384, 0.0
      $region52: #{aggregator_bi.1} parent=47 // pred_fallthru
        _
      %v401 = vld [vmem:[#allocation2] sm:$0xff]
      %v402 = vld [vmem:[#allocation2 + $0x8] sm:$0xff]
      %v403 = vld [vmem:[#allocation2 + $0x10] sm:$0xff]
      %v404 = vld [vmem:[#allocation2 + $0x18] sm:$0xff]
      %v405 = vld [vmem:[#allocation2 + $0x20] sm:$0xff]
      %v406 = vld [vmem:[#allocation2 + $0x28] sm:$0xff]
      %v407 = vld [vmem:[#allocation2 + $0x30] sm:$0xff]
      %v408 = vld [vmem:[#allocation2 + $0x38] sm:$0xff]
      %v409 = vld [vmem:[#allocation2 + $0x40] sm:$0xff]
      %v410 = vld [vmem:[#allocation2 + $0x48] sm:$0xff]
      %v411 = vld [vmem:[#allocation2 + $0x50] sm:$0xff]
      %v412 = vld [vmem:[#allocation2 + $0x58] sm:$0xff]
      %v413 = vld [vmem:[#allocation2 + $0x60] sm:$0xff]
      %v414 = vld [vmem:[#allocation2 + $0x68] sm:$0xff]
      %v415 = vld [vmem:[#allocation2 + $0x70] sm:$0xff]
      %v416 = vld [vmem:[#allocation2 + $0x78] sm:$0xff]
      %v417 = vld [vmem:[%s352] sm:$0xff]
      %v418 = vld [vmem:[%s352 + $0x8] sm:$0xff]
      %v419 = vld [vmem:[%s352 + $0x10] sm:$0xff]
      %v420 = vld [vmem:[%s352 + $0x18] sm:$0xff]
      %v421 = vld [vmem:[%s352 + $0x20] sm:$0xff]
      %v422 = vld [vmem:[%s352 + $0x28] sm:$0xff]
      %v423 = vld [vmem:[%s352 + $0x30] sm:$0xff]
      %v424 = vld [vmem:[%s352 + $0x38] sm:$0xff]
      %v425 = vld [vmem:[%s352 + $0x40] sm:$0xff]
      %v426 = vld [vmem:[%s352 + $0x48] sm:$0xff]
      %v427 = vld [vmem:[%s352 + $0x50] sm:$0xff]
      %v428 = vld [vmem:[%s352 + $0x58] sm:$0xff]
      %v429 = vld [vmem:[%s352 + $0x60] sm:$0xff]
      %v430 = vld [vmem:[%s352 + $0x68] sm:$0xff]
      %v431 = vld [vmem:[%s352 + $0x70] sm:$0xff]
      %v432 = vld [vmem:[%s352 + $0x78] sm:$0xff]
      %v433 = vld [vmem:[%s359] sm:$0xf]
      %v434 = vld [vmem:[%s359 + $0x4] sm:$0xf]
      %v435 = vld [vmem:[%s359 + $0x8] sm:$0xf]
      %v436 = vld [vmem:[%s359 + $0xc] sm:$0xf]
      %v437 = vld [vmem:[%s359 + $0x10] sm:$0xf]
      %v438 = vld [vmem:[%s359 + $0x14] sm:$0xf]
      %v439 = vld [vmem:[%s359 + $0x18] sm:$0xf]
      %v440 = vld [vmem:[%s359 + $0x1c] sm:$0xf]
      %v441 = vld [vmem:[%s359 + $0x20] sm:$0xf]
      %v442 = vld [vmem:[%s359 + $0x24] sm:$0xf]
      %v443 = vld [vmem:[%s359 + $0x28] sm:$0xf]
      %v444 = vld [vmem:[%s359 + $0x2c] sm:$0xf]
      %v445 = vld [vmem:[%s359 + $0x30] sm:$0xf]
      %v446 = vld [vmem:[%s359 + $0x34] sm:$0xf]
      %v447 = vld [vmem:[%s359 + $0x38] sm:$0xf]
      %v448 = vld [vmem:[%s359 + $0x3c] sm:$0xf]
      %v449 = vld [vmem:[%s359 + $0x40] sm:$0xf]
      %v450 = vld [vmem:[%s359 + $0x44] sm:$0xf]
      %v451 = vld [vmem:[%s359 + $0x48] sm:$0xf]
      %v452 = vld [vmem:[%s359 + $0x4c] sm:$0xf]
      %v453 = vld [vmem:[%s359 + $0x50] sm:$0xf]
      %v454 = vld [vmem:[%s359 + $0x54] sm:$0xf]
      %v455 = vld [vmem:[%s359 + $0x58] sm:$0xf]
      %v456 = vld [vmem:[%s359 + $0x5c] sm:$0xf]
      %v457 = vld [vmem:[%s359 + $0x60] sm:$0xf]
      %v458 = vld [vmem:[%s359 + $0x64] sm:$0xf]
      %v459 = vld [vmem:[%s359 + $0x68] sm:$0xf]
      %v460 = vld [vmem:[%s359 + $0x6c] sm:$0xf]
      %v461 = vld [vmem:[%s359 + $0x70] sm:$0xf]
      %v462 = vld [vmem:[%s359 + $0x74] sm:$0xf]
      %v463 = vld [vmem:[%s359 + $0x78] sm:$0xf]
      %v464 = vld [vmem:[%s359 + $0x7c] sm:$0xf]
      %v481 = vunpack.c.l.b16 %v417
      %v482 = vunpack.c.h.b16 %v417
      %v483 = vunpack.c.l.b16 %v418
      %v484 = vunpack.c.h.b16 %v418
      %v485 = vunpack.c.l.b16 %v419
      %v486 = vunpack.c.h.b16 %v419
      %v487 = vunpack.c.l.b16 %v420
      %v488 = vunpack.c.h.b16 %v420
      %v489 = vunpack.c.l.b16 %v421
      %v490 = vunpack.c.h.b16 %v421
      %v491 = vunpack.c.l.b16 %v422
      %v492 = vunpack.c.h.b16 %v422
      %v493 = vunpack.c.l.b16 %v423
      %v494 = vunpack.c.h.b16 %v423
      %v495 = vunpack.c.l.b16 %v424
      %v496 = vunpack.c.h.b16 %v424
      %v497 = vunpack.c.l.b16 %v425
      %v498 = vunpack.c.h.b16 %v425
      %v499 = vunpack.c.l.b16 %v426
      %v500 = vunpack.c.h.b16 %v426
      %v501 = vunpack.c.l.b16 %v427
      %v502 = vunpack.c.h.b16 %v427
      %v503 = vunpack.c.l.b16 %v428
      %v504 = vunpack.c.h.b16 %v428
      %v505 = vunpack.c.l.b16 %v429
      %v506 = vunpack.c.h.b16 %v429
      %v507 = vunpack.c.l.b16 %v430
      %v508 = vunpack.c.h.b16 %v430
      %v509 = vunpack.c.l.b16 %v431
      %v510 = vunpack.c.h.b16 %v431
      %v511 = vunpack.c.l.b16 %v432
      %v512 = vunpack.c.h.b16 %v432
      %v513 = vpack.c.b16 %v483, %v481
      %v514 = vpack.c.b16 %v484, %v482
      %v515 = vpack.c.b16 %v487, %v485
      %v516 = vpack.c.b16 %v488, %v486
      %v517 = vpack.c.b16 %v491, %v489
      %v518 = vpack.c.b16 %v492, %v490
      %v519 = vpack.c.b16 %v495, %v493
      %v520 = vpack.c.b16 %v496, %v494
      %v521 = vpack.c.b16 %v499, %v497
      %v522 = vpack.c.b16 %v500, %v498
      %v523 = vpack.c.b16 %v503, %v501
      %v524 = vpack.c.b16 %v504, %v502
      %v525 = vpack.c.b16 %v507, %v505
      %v526 = vpack.c.b16 %v508, %v506
      %v527 = vpack.c.b16 %v511, %v509
      %v528 = vpack.c.b16 %v512, %v510
      %v577 = vunpack.c.l.b16 %v433
      %v578 = vunpack.c.l.b16 %v434
      %v579 = vunpack.c.l.b16 %v435
      %v580 = vunpack.c.l.b16 %v436
      %v581 = vunpack.c.l.b16 %v437
      %v582 = vunpack.c.l.b16 %v438
      %v583 = vunpack.c.l.b16 %v439
      %v584 = vunpack.c.l.b16 %v440
      %v585 = vunpack.c.l.b16 %v441
      %v586 = vunpack.c.l.b16 %v442
      %v587 = vunpack.c.l.b16 %v443
      %v588 = vunpack.c.l.b16 %v444
      %v589 = vunpack.c.l.b16 %v445
      %v590 = vunpack.c.l.b16 %v446
      %v591 = vunpack.c.l.b16 %v447
      %v592 = vunpack.c.l.b16 %v448
      %v593 = vunpack.c.l.b16 %v449
      %v594 = vunpack.c.l.b16 %v450
      %v595 = vunpack.c.l.b16 %v451
      %v596 = vunpack.c.l.b16 %v452
      %v597 = vunpack.c.l.b16 %v453
      %v598 = vunpack.c.l.b16 %v454
      %v599 = vunpack.c.l.b16 %v455
      %v600 = vunpack.c.l.b16 %v456
      %v601 = vunpack.c.l.b16 %v457
      %v602 = vunpack.c.l.b16 %v458
      %v603 = vunpack.c.l.b16 %v459
      %v604 = vunpack.c.l.b16 %v460
      %v605 = vunpack.c.l.b16 %v461
      %v606 = vunpack.c.l.b16 %v462
      %v607 = vunpack.c.l.b16 %v463
      %v608 = vunpack.c.l.b16 %v464
      %v609 = vpack.c.b16 %v578, %v577
      %v610 = vpack.c.b16 %v580, %v579
      %v611 = vpack.c.b16 %v582, %v581
      %v612 = vpack.c.b16 %v584, %v583
      %v613 = vpack.c.b16 %v586, %v585
      %v614 = vpack.c.b16 %v588, %v587
      %v615 = vpack.c.b16 %v590, %v589
      %v616 = vpack.c.b16 %v592, %v591
      %v617 = vpack.c.b16 %v594, %v593
      %v618 = vpack.c.b16 %v596, %v595
      %v619 = vpack.c.b16 %v598, %v597
      %v620 = vpack.c.b16 %v600, %v599
      %v621 = vpack.c.b16 %v602, %v601
      %v622 = vpack.c.b16 %v604, %v603
      %v623 = vpack.c.b16 %v606, %v605
      %v624 = vpack.c.b16 %v608, %v607
      %641 = vmatprep.subr.bf16.mxu0 0
      %642 = vmatpush1.bf16.msra.mxu0 %v616
      %643 = vmatprep.subr.bf16.mxu0 0
      %644 = vmatpush1.bf16.msra.mxu0 %v615
      %645 = vmatprep.subr.bf16.mxu0 0
      %646 = vmatpush1.bf16.msra.mxu0 %v614
      %647 = vmatprep.subr.bf16.mxu0 0
      %648 = vmatpush1.bf16.msra.mxu0 %v613
      %649 = vmatprep.subr.bf16.mxu0 0
      %650 = vmatpush1.bf16.msra.mxu0 %v612
      %651 = vmatprep.subr.bf16.mxu0 0
      %652 = vmatpush1.bf16.msra.mxu0 %v611
      %653 = vmatprep.subr.bf16.mxu0 0
      %654 = vmatpush1.bf16.msra.mxu0 %v610
      %655 = vmatprep.subr.bf16.mxu0 0
      %656 = vmatpush1.bf16.msra.mxu0 %v609
      %657 = vmatprep.subr.bf16.mxu0 0
      %658 = vmatpush2.bf16.msra.mxu0 %v624
      %659 = vmatprep.subr.bf16.mxu0 0
      %660 = vmatpush2.bf16.msra.mxu0 %v623
      %661 = vmatprep.subr.bf16.mxu0 0
      %662 = vmatpush2.bf16.msra.mxu0 %v622
      %663 = vmatprep.subr.bf16.mxu0 0
      %664 = vmatpush2.bf16.msra.mxu0 %v621
      %665 = vmatprep.subr.bf16.mxu0 0
      %666 = vmatpush2.bf16.msra.mxu0 %v620
      %667 = vmatprep.subr.bf16.mxu0 0
      %668 = vmatpush2.bf16.msra.mxu0 %v619
      %669 = vmatprep.subr.bf16.mxu0 0
      %670 = vmatpush2.bf16.msra.mxu0 %v618
      %671 = vmatprep.subr.bf16.mxu0 0
      %672 = vmatpush2.bf16.msra.mxu0 %v617
      %673 = vmatprep.mubr.bf16.mxu0 %v514
      %674 = vmatmul.mubr.bf16.gmra.mxu0 %v513
      %v675 = vpop.f32.mrf.mxu0
      %v676 = vadd.f32 0.0, %v675
      %v677 = vpop.f32.mrf.mxu0
      %v678 = vpop.f32.mrf.mxu0
      %v679 = vadd.f32 0.0, %v678
      %v680 = vpop.f32.mrf.mxu0
      %681 = vmatprep.mubr.bf16.mxu0 %v516
      %682 = vmatmul.mubr.bf16.gmra.mxu0 %v515
      %v683 = vpop.f32.mrf.mxu0
      %v684 = vadd.f32 0.0, %v683
      %v685 = vpop.f32.mrf.mxu0
      %v686 = vpop.f32.mrf.mxu0
      %v687 = vadd.f32 0.0, %v686
      %v688 = vpop.f32.mrf.mxu0
      %689 = vmatprep.mubr.bf16.mxu0 %v518
      %690 = vmatmul.mubr.bf16.gmra.mxu0 %v517
      %v691 = vpop.f32.mrf.mxu0
      %v692 = vadd.f32 0.0, %v691
      %v693 = vpop.f32.mrf.mxu0
      %v694 = vpop.f32.mrf.mxu0
      %v695 = vadd.f32 0.0, %v694
      %v696 = vpop.f32.mrf.mxu0
      %697 = vmatprep.mubr.bf16.mxu0 %v520
      %698 = vmatmul.mubr.bf16.gmra.mxu0 %v519
      %v699 = vpop.f32.mrf.mxu0
      %v700 = vadd.f32 0.0, %v699
      %v701 = vpop.f32.mrf.mxu0
      %v702 = vpop.f32.mrf.mxu0
      %v703 = vadd.f32 0.0, %v702
      %v704 = vpop.f32.mrf.mxu0
      %705 = vmatprep.mubr.bf16.mxu0 %v522
      %706 = vmatmul.mubr.bf16.gmra.mxu0 %v521
      %v707 = vpop.f32.mrf.mxu0
      %v708 = vadd.f32 0.0, %v707
      %v709 = vpop.f32.mrf.mxu0
      %v710 = vpop.f32.mrf.mxu0
      %v711 = vadd.f32 0.0, %v710
      %v712 = vpop.f32.mrf.mxu0
      %713 = vmatprep.mubr.bf16.mxu0 %v524
      %714 = vmatmul.mubr.bf16.gmra.mxu0 %v523
      %v715 = vpop.f32.mrf.mxu0
      %v716 = vadd.f32 0.0, %v715
      %v717 = vpop.f32.mrf.mxu0
      %v718 = vpop.f32.mrf.mxu0
      %v719 = vadd.f32 0.0, %v718
      %v720 = vpop.f32.mrf.mxu0
      %721 = vmatprep.mubr.bf16.mxu0 %v526
      %722 = vmatmul.mubr.bf16.gmra.mxu0 %v525
      %v723 = vpop.f32.mrf.mxu0
      %v724 = vadd.f32 0.0, %v723
      %v725 = vpop.f32.mrf.mxu0
      %v726 = vpop.f32.mrf.mxu0
      %v727 = vadd.f32 0.0, %v726
      %v728 = vpop.f32.mrf.mxu0
      %729 = vmatprep.mubr.bf16.mxu0 %v528
      %730 = vmatmul.mubr.bf16.gmra.mxu0 %v527
      %v731 = vpop.f32.mrf.mxu0
      %v732 = vadd.f32 0.0, %v731
      %v733 = vpop.f32.mrf.mxu0
      %v734 = vpop.f32.mrf.mxu0
      %v735 = vadd.f32 0.0, %v734
      %v736 = vpop.f32.mrf.mxu0
      %737 = vdwg.mxu0
      %v738 = vadd.f32 %v401, %v676
      %v739 = vadd.f32 %v402, %v679
      %v740 = vadd.f32 %v403, %v684
      %v741 = vadd.f32 %v404, %v687
      %v742 = vadd.f32 %v405, %v692
      %v743 = vadd.f32 %v406, %v695
      %v744 = vadd.f32 %v407, %v700
      %v745 = vadd.f32 %v408, %v703
      %v746 = vadd.f32 %v409, %v708
      %v747 = vadd.f32 %v410, %v711
      %v748 = vadd.f32 %v411, %v716
      %v749 = vadd.f32 %v412, %v719
      %v750 = vadd.f32 %v413, %v724
      %v751 = vadd.f32 %v414, %v727
      %v752 = vadd.f32 %v415, %v732
      %v753 = vadd.f32 %v416, %v735
      %vm754 = vcmask 523264
      %755 = vst.msk [vmem:[#allocation2] sm:$0xff] %vm754, %v738
      %756 = vst.msk [vmem:[#allocation2 + $0x8] sm:$0xff] %vm754, %v739
      %757 = vst.msk [vmem:[#allocation2 + $0x10] sm:$0xff] %vm754, %v740
      %758 = vst.msk [vmem:[#allocation2 + $0x18] sm:$0xff] %vm754, %v741
      %759 = vst.msk [vmem:[#allocation2 + $0x20] sm:$0xff] %vm754, %v742
      %760 = vst.msk [vmem:[#allocation2 + $0x28] sm:$0xff] %vm754, %v743
      %761 = vst.msk [vmem:[#allocation2 + $0x30] sm:$0xff] %vm754, %v744
      %762 = vst.msk [vmem:[#allocation2 + $0x38] sm:$0xff] %vm754, %v745
      %763 = vst.msk [vmem:[#allocation2 + $0x40] sm:$0xff] %vm754, %v746
      %764 = vst.msk [vmem:[#allocation2 + $0x48] sm:$0xff] %vm754, %v747
      %765 = vst.msk [vmem:[#allocation2 + $0x50] sm:$0xff] %vm754, %v748
      %766 = vst.msk [vmem:[#allocation2 + $0x58] sm:$0xff] %vm754, %v749
      %767 = vst.msk [vmem:[#allocation2 + $0x60] sm:$0xff] %vm754, %v750
      %768 = vst.msk [vmem:[#allocation2 + $0x68] sm:$0xff] %vm754, %v751
      %769 = vst.msk [vmem:[#allocation2 + $0x70] sm:$0xff] %vm754, %v752
      %770 = vst.msk [vmem:[#allocation2 + $0x78] sm:$0xff] %vm754, %v753
      // Predicated region
      $region53: #{aggregator_bi.1} parent=47 // pred_check
        %p771 = pneg %p380
      $region54: #{aggregator_bi.1} parent=47 // pred_check_branch
        %773 = sbr.rel (%p771) target = $region56
      $region55: #{aggregator_bi.1} parent=47 // pred_region
        %v774 = vld [vmem:[#allocation2] sm:$0xff]
        %v775 = vld [vmem:[#allocation2 + $0x8] sm:$0xff]
        %v776 = vld [vmem:[#allocation2 + $0x10] sm:$0xff]
        %v777 = vld [vmem:[#allocation2 + $0x18] sm:$0xff]
        %v778 = vld [vmem:[#allocation2 + $0x20] sm:$0xff]
        %v779 = vld [vmem:[#allocation2 + $0x28] sm:$0xff]
        %v780 = vld [vmem:[#allocation2 + $0x30] sm:$0xff]
        %v781 = vld [vmem:[#allocation2 + $0x38] sm:$0xff]
        %v782 = vld [vmem:[#allocation2 + $0x40] sm:$0xff]
        %v783 = vld [vmem:[#allocation2 + $0x48] sm:$0xff]
        %v784 = vld [vmem:[#allocation2 + $0x50] sm:$0xff]
        %v785 = vld [vmem:[#allocation2 + $0x58] sm:$0xff]
        %v786 = vld [vmem:[#allocation2 + $0x60] sm:$0xff]
        %v787 = vld [vmem:[#allocation2 + $0x68] sm:$0xff]
        %v788 = vld [vmem:[#allocation2 + $0x70] sm:$0xff]
        %v789 = vld [vmem:[#allocation2 + $0x78] sm:$0xff]
        %v790 = vld [vmem:[%s365] sm:$0xff]
        %v791 = vld [vmem:[%s365 + $0x8] sm:$0xff]
        %v792 = vld [vmem:[%s365 + $0x10] sm:$0xff]
        %v793 = vld [vmem:[%s365 + $0x18] sm:$0xff]
        %v794 = vld [vmem:[%s365 + $0x20] sm:$0xff]
        %v795 = vld [vmem:[%s365 + $0x28] sm:$0xff]
        %v796 = vld [vmem:[%s365 + $0x30] sm:$0xff]
        %v797 = vld [vmem:[%s365 + $0x38] sm:$0xff]
        %v798 = vld [vmem:[%s365 + $0x40] sm:$0xff]
        %v799 = vld [vmem:[%s365 + $0x48] sm:$0xff]
        %v800 = vld [vmem:[%s365 + $0x50] sm:$0xff]
        %v801 = vld [vmem:[%s365 + $0x58] sm:$0xff]
        %v802 = vld [vmem:[%s365 + $0x60] sm:$0xff]
        %v803 = vld [vmem:[%s365 + $0x68] sm:$0xff]
        %v804 = vld [vmem:[%s365 + $0x70] sm:$0xff]
        %v805 = vld [vmem:[%s365 + $0x78] sm:$0xff]
        %v806 = vld [vmem:[%s371] sm:$0xff]
        %v807 = vld [vmem:[%s371 + $0x8] sm:$0xff]
        %v808 = vld [vmem:[%s371 + $0x10] sm:$0xff]
        %v809 = vld [vmem:[%s371 + $0x18] sm:$0xff]
        %v810 = vld [vmem:[%s371 + $0x20] sm:$0xff]
        %v811 = vld [vmem:[%s371 + $0x28] sm:$0xff]
        %v812 = vld [vmem:[%s371 + $0x30] sm:$0xff]
        %v813 = vld [vmem:[%s371 + $0x38] sm:$0xff]
        %v814 = vld [vmem:[%s371 + $0x40] sm:$0xff]
        %v815 = vld [vmem:[%s371 + $0x48] sm:$0xff]
        %v816 = vld [vmem:[%s371 + $0x50] sm:$0xff]
        %v817 = vld [vmem:[%s371 + $0x58] sm:$0xff]
        %v818 = vld [vmem:[%s371 + $0x60] sm:$0xff]
        %v819 = vld [vmem:[%s371 + $0x68] sm:$0xff]
        %v820 = vld [vmem:[%s371 + $0x70] sm:$0xff]
        %v821 = vld [vmem:[%s371 + $0x78] sm:$0xff]
        %838 = vrot.lane.b32.xlu0 %v774, 96
        %v839 = vpop.permute.xlu0 %838
        %840 = vrot.lane.b32.xlu0 %v775, 96
        %v841 = vpop.permute.xlu0 %840
        %842 = vrot.lane.b32.xlu0 %v776, 96
        %v843 = vpop.permute.xlu0 %842
        %844 = vrot.lane.b32.xlu0 %v777, 96
        %v845 = vpop.permute.xlu0 %844
        %846 = vrot.lane.b32.xlu0 %v778, 96
        %v847 = vpop.permute.xlu0 %846
        %848 = vrot.lane.b32.xlu0 %v779, 96
        %v849 = vpop.permute.xlu0 %848
        %850 = vrot.lane.b32.xlu0 %v780, 96
        %v851 = vpop.permute.xlu0 %850
        %852 = vrot.lane.b32.xlu0 %v781, 96
        %v853 = vpop.permute.xlu0 %852
        %854 = vrot.lane.b32.xlu0 %v782, 96
        %v855 = vpop.permute.xlu0 %854
        %856 = vrot.lane.b32.xlu0 %v783, 96
        %v857 = vpop.permute.xlu0 %856
        %858 = vrot.lane.b32.xlu0 %v784, 96
        %v859 = vpop.permute.xlu0 %858
        %860 = vrot.lane.b32.xlu0 %v785, 96
        %v861 = vpop.permute.xlu0 %860
        %862 = vrot.lane.b32.xlu0 %v786, 96
        %v863 = vpop.permute.xlu0 %862
        %864 = vrot.lane.b32.xlu0 %v787, 96
        %v865 = vpop.permute.xlu0 %864
        %866 = vrot.lane.b32.xlu0 %v788, 96
        %v867 = vpop.permute.xlu0 %866
        %868 = vrot.lane.b32.xlu0 %v789, 96
        %v869 = vpop.permute.xlu0 %868
        %v886 = vadd.f32 %v806, %v839
        %v887 = vadd.f32 %v807, %v841
        %v888 = vadd.f32 %v808, %v843
        %v889 = vadd.f32 %v809, %v845
        %v890 = vadd.f32 %v810, %v847
        %v891 = vadd.f32 %v811, %v849
        %v892 = vadd.f32 %v812, %v851
        %v893 = vadd.f32 %v813, %v853
        %v894 = vadd.f32 %v814, %v855
        %v895 = vadd.f32 %v815, %v857
        %v896 = vadd.f32 %v816, %v859
        %v897 = vadd.f32 %v817, %v861
        %v898 = vadd.f32 %v818, %v863
        %v899 = vadd.f32 %v819, %v865
        %v900 = vadd.f32 %v820, %v867
        %v901 = vadd.f32 %v821, %v869
        %v902 = vld [vmem:[%s5] sm:$0x1]
        %v904 = vlaneseq
        %v905 = vshrl.u32 %v904, 7
        %v906 = vsub.s32 0, %v905
        %v907 = vrot.slane %v902, %v906
        %v909 = vadd.f32 %v886, %v907
        %v910 = vadd.f32 %v887, %v907
        %v911 = vadd.f32 %v888, %v907
        %v912 = vadd.f32 %v889, %v907
        %v913 = vadd.f32 %v890, %v907
        %v914 = vadd.f32 %v891, %v907
        %v915 = vadd.f32 %v892, %v907
        %v916 = vadd.f32 %v893, %v907
        %v917 = vadd.f32 %v894, %v907
        %v918 = vadd.f32 %v895, %v907
        %v919 = vadd.f32 %v896, %v907
        %v920 = vadd.f32 %v897, %v907
        %v921 = vadd.f32 %v898, %v907
        %v922 = vadd.f32 %v899, %v907
        %v923 = vadd.f32 %v900, %v907
        %v924 = vadd.f32 %v901, %v907
        %vm925 = vcmp.ge.f32.partialorder %v909, 0.0
        %vm926 = vcmp.ge.f32.partialorder %v910, 0.0
        %vm927 = vcmp.ge.f32.partialorder %v911, 0.0
        %vm928 = vcmp.ge.f32.partialorder %v912, 0.0
        %vm929 = vcmp.ge.f32.partialorder %v913, 0.0
        %vm930 = vcmp.ge.f32.partialorder %v914, 0.0
        %vm931 = vcmp.ge.f32.partialorder %v915, 0.0
        %vm932 = vcmp.ge.f32.partialorder %v916, 0.0
        %vm933 = vcmp.ge.f32.partialorder %v917, 0.0
        %vm934 = vcmp.ge.f32.partialorder %v918, 0.0
        %vm935 = vcmp.ge.f32.partialorder %v919, 0.0
        %vm936 = vcmp.ge.f32.partialorder %v920, 0.0
        %vm937 = vcmp.ge.f32.partialorder %v921, 0.0
        %vm938 = vcmp.ge.f32.partialorder %v922, 0.0
        %vm939 = vcmp.ge.f32.partialorder %v923, 0.0
        %vm940 = vcmp.ge.f32.partialorder %v924, 0.0
        %v941 = vmul.f32 %v909, 0.01
        %v942 = vmul.f32 %v910, 0.01
        %v943 = vmul.f32 %v911, 0.01
        %v944 = vmul.f32 %v912, 0.01
        %v945 = vmul.f32 %v913, 0.01
        %v946 = vmul.f32 %v914, 0.01
        %v947 = vmul.f32 %v915, 0.01
        %v948 = vmul.f32 %v916, 0.01
        %v949 = vmul.f32 %v917, 0.01
        %v950 = vmul.f32 %v918, 0.01
        %v951 = vmul.f32 %v919, 0.01
        %v952 = vmul.f32 %v920, 0.01
        %v953 = vmul.f32 %v921, 0.01
        %v954 = vmul.f32 %v922, 0.01
        %v955 = vmul.f32 %v923, 0.01
        %v956 = vmul.f32 %v924, 0.01
        %v957 = vsel %vm925, %v909, %v941
        %v958 = vsel %vm926, %v910, %v942
        %v959 = vsel %vm927, %v911, %v943
        %v960 = vsel %vm928, %v912, %v944
        %v961 = vsel %vm929, %v913, %v945
        %v962 = vsel %vm930, %v914, %v946
        %v963 = vsel %vm931, %v915, %v947
        %v964 = vsel %vm932, %v916, %v948
        %v965 = vsel %vm933, %v917, %v949
        %v966 = vsel %vm934, %v918, %v950
        %v967 = vsel %vm935, %v919, %v951
        %v968 = vsel %vm936, %v920, %v952
        %v969 = vsel %vm937, %v921, %v953
        %v970 = vsel %vm938, %v922, %v954
        %v971 = vsel %vm939, %v923, %v955
        %v972 = vsel %vm940, %v924, %v956
        %v973 = vmul.f32 %v790, %v774
        %v974 = vmul.f32 %v791, %v775
        %v975 = vmul.f32 %v792, %v776
        %v976 = vmul.f32 %v793, %v777
        %v977 = vmul.f32 %v794, %v778
        %v978 = vmul.f32 %v795, %v779
        %v979 = vmul.f32 %v796, %v780
        %v980 = vmul.f32 %v797, %v781
        %v981 = vmul.f32 %v798, %v782
        %v982 = vmul.f32 %v799, %v783
        %v983 = vmul.f32 %v800, %v784
        %v984 = vmul.f32 %v801, %v785
        %v985 = vmul.f32 %v802, %v786
        %v986 = vmul.f32 %v803, %v787
        %v987 = vmul.f32 %v804, %v788
        %v988 = vmul.f32 %v805, %v789
        %v989 = vld [vmem:[%s4] sm:$0xff]
        %v990 = vld [vmem:[%s4 + $0x8] sm:$0xff]
        %v991 = vld [vmem:[%s4 + $0x10] sm:$0xff]
        %v992 = vld [vmem:[%s4 + $0x18] sm:$0xff]
        %v993 = vld [vmem:[%s6] sm:$0x1]
        %v995 = vlaneseq
        %v996 = vshrl.u32 %v995, 7
        %v997 = vsub.s32 0, %v996
        %v998 = vrot.slane %v993, %v997
        %vm1000 = vcmask 261120
        %v1002 = vsel %vm1000, %v973, 0
        %v1005 = vsel %vm1000, %v974, 0
        %v1008 = vsel %vm1000, %v975, 0
        %v1011 = vsel %vm1000, %v976, 0
        %v1014 = vsel %vm1000, %v977, 0
        %v1017 = vsel %vm1000, %v978, 0
        %v1020 = vsel %vm1000, %v979, 0
        %v1023 = vsel %vm1000, %v980, 0
        %v1026 = vsel %vm1000, %v981, 0
        %v1029 = vsel %vm1000, %v982, 0
        %v1032 = vsel %vm1000, %v983, 0
        %v1035 = vsel %vm1000, %v984, 0
        %v1038 = vsel %vm1000, %v985, 0
        %v1041 = vsel %vm1000, %v986, 0
        %v1044 = vsel %vm1000, %v987, 0
        %v1047 = vsel %vm1000, %v988, 0
        %1049 = vmatprep.subr.mxu0 0.0
        %1050 = vmatpush1.msra.mxu0 0.0
        %1051 = vmatprep.subr.mxu0 0.0
        %1052 = vmatpush1.msra.mxu0 0.0
        %1053 = vmatprep.subr.mxu0 0.0
        %1054 = vmatpush1.msra.mxu0 0.0
        %1055 = vmatprep.subr.mxu0 0.0
        %1056 = vmatpush1.msra.mxu0 0.0
        %1057 = vmatprep.subr.mxu0 0.0
        %1058 = vmatpush1.msra.mxu0 0.0
        %1059 = vmatprep.subr.mxu0 0.0
        %1060 = vmatpush1.msra.mxu0 0.0
        %1061 = vmatprep.subr.mxu0 0.0
        %1062 = vmatpush1.msra.mxu0 0.0
        %1063 = vmatprep.subr.mxu0 0.0
        %1064 = vmatpush1.msra.mxu0 0.0
        %1065 = vmatprep.subr.mxu0 0.0
        %1066 = vmatpush1.msra.mxu0 0.0
        %1067 = vmatprep.subr.mxu0 0.0
        %1068 = vmatpush1.msra.mxu0 0.0
        %1069 = vmatprep.subr.mxu0 0.0
        %1070 = vmatpush1.msra.mxu0 0.0
        %1071 = vmatprep.subr.mxu0 0.0
        %1072 = vmatpush1.msra.mxu0 0.0
        %1073 = vmatprep.subr.mxu0 0.0
        %1074 = vmatpush1.msra.mxu0 %v992
        %1075 = vmatprep.subr.mxu0 0.0
        %1076 = vmatpush1.msra.mxu0 %v991
        %1077 = vmatprep.subr.mxu0 0.0
        %1078 = vmatpush1.msra.mxu0 %v990
        %1079 = vmatprep.subr.mxu0 0.0
        %1080 = vmatpush1.msra.mxu0 %v989
        %1081 = vmatprep.subr.mxu0 0.0
        %1082 = vmatpush2.msra.mxu0 0.0
        %1083 = vmatprep.subr.mxu0 0.0
        %1084 = vmatpush2.msra.mxu0 0.0
        %1085 = vmatprep.subr.mxu0 0.0
        %1086 = vmatpush2.msra.mxu0 0.0
        %1087 = vmatprep.subr.mxu0 0.0
        %1088 = vmatpush2.msra.mxu0 0.0
        %1089 = vmatprep.subr.mxu0 0.0
        %1090 = vmatpush2.msra.mxu0 0.0
        %1091 = vmatprep.subr.mxu0 0.0
        %1092 = vmatpush2.msra.mxu0 0.0
        %1093 = vmatprep.subr.mxu0 0.0
        %1094 = vmatpush2.msra.mxu0 0.0
        %1095 = vmatprep.subr.mxu0 0.0
        %1096 = vmatpush2.msra.mxu0 0.0
        %1097 = vmatprep.subr.mxu0 0.0
        %1098 = vmatpush2.msra.mxu0 0.0
        %1099 = vmatprep.subr.mxu0 0.0
        %1100 = vmatpush2.msra.mxu0 0.0
        %1101 = vmatprep.subr.mxu0 0.0
        %1102 = vmatpush2.msra.mxu0 0.0
        %1103 = vmatprep.subr.mxu0 0.0
        %1104 = vmatpush2.msra.mxu0 0.0
        %1105 = vmatprep.subr.mxu0 0.0
        %1106 = vmatpush2.msra.mxu0 0.0
        %1107 = vmatprep.subr.mxu0 0.0
        %1108 = vmatpush2.msra.mxu0 0.0
        %1109 = vmatprep.subr.mxu0 0.0
        %1110 = vmatpush2.msra.mxu0 0.0
        %1111 = vmatprep.subr.mxu0 0.0
        %1112 = vmatpush2.msra.mxu0 0.0
        %1113 = vmatprep.mubr.f32.mxu0 0.0
        %1114 = vmatmul.mubr.f32.gmra.mxu0 %v1002
        %v1115 = vpop.f32.mrf.mxu0
        %v1116 = vadd.f32 %v998, %v1115
        %v1117 = vpop.f32.mrf.mxu0
        %1118 = vmatprep.mubr.f32.mxu0 0.0
        %1119 = vmatmul.mubr.f32.gmra.mxu0 %v1005
        %v1120 = vpop.f32.mrf.mxu0
        %v1121 = vadd.f32 %v998, %v1120
        %v1122 = vpop.f32.mrf.mxu0
        %1123 = vmatprep.mubr.f32.mxu0 0.0
        %1124 = vmatmul.mubr.f32.gmra.mxu0 %v1008
        %v1125 = vpop.f32.mrf.mxu0
        %v1126 = vadd.f32 %v998, %v1125
        %v1127 = vpop.f32.mrf.mxu0
        %1128 = vmatprep.mubr.f32.mxu0 0.0
        %1129 = vmatmul.mubr.f32.gmra.mxu0 %v1011
        %v1130 = vpop.f32.mrf.mxu0
        %v1131 = vadd.f32 %v998, %v1130
        %v1132 = vpop.f32.mrf.mxu0
        %1133 = vmatprep.mubr.f32.mxu0 0.0
        %1134 = vmatmul.mubr.f32.gmra.mxu0 %v1014
        %v1135 = vpop.f32.mrf.mxu0
        %v1136 = vadd.f32 %v998, %v1135
        %v1137 = vpop.f32.mrf.mxu0
        %1138 = vmatprep.mubr.f32.mxu0 0.0
        %1139 = vmatmul.mubr.f32.gmra.mxu0 %v1017
        %v1140 = vpop.f32.mrf.mxu0
        %v1141 = vadd.f32 %v998, %v1140
        %v1142 = vpop.f32.mrf.mxu0
        %1143 = vmatprep.mubr.f32.mxu0 0.0
        %1144 = vmatmul.mubr.f32.gmra.mxu0 %v1020
        %v1145 = vpop.f32.mrf.mxu0
        %v1146 = vadd.f32 %v998, %v1145
        %v1147 = vpop.f32.mrf.mxu0
        %1148 = vmatprep.mubr.f32.mxu0 0.0
        %1149 = vmatmul.mubr.f32.gmra.mxu0 %v1023
        %v1150 = vpop.f32.mrf.mxu0
        %v1151 = vadd.f32 %v998, %v1150
        %v1152 = vpop.f32.mrf.mxu0
        %1153 = vmatprep.mubr.f32.mxu0 0.0
        %1154 = vmatmul.mubr.f32.gmra.mxu0 %v1026
        %v1155 = vpop.f32.mrf.mxu0
        %v1156 = vadd.f32 %v998, %v1155
        %v1157 = vpop.f32.mrf.mxu0
        %1158 = vmatprep.mubr.f32.mxu0 0.0
        %1159 = vmatmul.mubr.f32.gmra.mxu0 %v1029
        %v1160 = vpop.f32.mrf.mxu0
        %v1161 = vadd.f32 %v998, %v1160
        %v1162 = vpop.f32.mrf.mxu0
        %1163 = vmatprep.mubr.f32.mxu0 0.0
        %1164 = vmatmul.mubr.f32.gmra.mxu0 %v1032
        %v1165 = vpop.f32.mrf.mxu0
        %v1166 = vadd.f32 %v998, %v1165
        %v1167 = vpop.f32.mrf.mxu0
        %1168 = vmatprep.mubr.f32.mxu0 0.0
        %1169 = vmatmul.mubr.f32.gmra.mxu0 %v1035
        %v1170 = vpop.f32.mrf.mxu0
        %v1171 = vadd.f32 %v998, %v1170
        %v1172 = vpop.f32.mrf.mxu0
        %1173 = vmatprep.mubr.f32.mxu0 0.0
        %1174 = vmatmul.mubr.f32.gmra.mxu0 %v1038
        %v1175 = vpop.f32.mrf.mxu0
        %v1176 = vadd.f32 %v998, %v1175
        %v1177 = vpop.f32.mrf.mxu0
        %1178 = vmatprep.mubr.f32.mxu0 0.0
        %1179 = vmatmul.mubr.f32.gmra.mxu0 %v1041
        %v1180 = vpop.f32.mrf.mxu0
        %v1181 = vadd.f32 %v998, %v1180
        %v1182 = vpop.f32.mrf.mxu0
        %1183 = vmatprep.mubr.f32.mxu0 0.0
        %1184 = vmatmul.mubr.f32.gmra.mxu0 %v1044
        %v1185 = vpop.f32.mrf.mxu0
        %v1186 = vadd.f32 %v998, %v1185
        %v1187 = vpop.f32.mrf.mxu0
        %1188 = vmatprep.mubr.f32.mxu0 0.0
        %1189 = vmatmul.mubr.f32.gmra.mxu0 %v1047
        %v1190 = vpop.f32.mrf.mxu0
        %v1191 = vadd.f32 %v998, %v1190
        %v1192 = vpop.f32.mrf.mxu0
        %1193 = vdwg.mxu0
        %vm1194 = vcmp.ge.f32.partialorder %v1116, 0.0
        %vm1195 = vcmp.ge.f32.partialorder %v1121, 0.0
        %vm1196 = vcmp.ge.f32.partialorder %v1126, 0.0
        %vm1197 = vcmp.ge.f32.partialorder %v1131, 0.0
        %vm1198 = vcmp.ge.f32.partialorder %v1136, 0.0
        %vm1199 = vcmp.ge.f32.partialorder %v1141, 0.0
        %vm1200 = vcmp.ge.f32.partialorder %v1146, 0.0
        %vm1201 = vcmp.ge.f32.partialorder %v1151, 0.0
        %vm1202 = vcmp.ge.f32.partialorder %v1156, 0.0
        %vm1203 = vcmp.ge.f32.partialorder %v1161, 0.0
        %vm1204 = vcmp.ge.f32.partialorder %v1166, 0.0
        %vm1205 = vcmp.ge.f32.partialorder %v1171, 0.0
        %vm1206 = vcmp.ge.f32.partialorder %v1176, 0.0
        %vm1207 = vcmp.ge.f32.partialorder %v1181, 0.0
        %vm1208 = vcmp.ge.f32.partialorder %v1186, 0.0
        %vm1209 = vcmp.ge.f32.partialorder %v1191, 0.0
        %v1210 = vmul.f32 %v1116, 0.01
        %v1211 = vmul.f32 %v1121, 0.01
        %v1212 = vmul.f32 %v1126, 0.01
        %v1213 = vmul.f32 %v1131, 0.01
        %v1214 = vmul.f32 %v1136, 0.01
        %v1215 = vmul.f32 %v1141, 0.01
        %v1216 = vmul.f32 %v1146, 0.01
        %v1217 = vmul.f32 %v1151, 0.01
        %v1218 = vmul.f32 %v1156, 0.01
        %v1219 = vmul.f32 %v1161, 0.01
        %v1220 = vmul.f32 %v1166, 0.01
        %v1221 = vmul.f32 %v1171, 0.01
        %v1222 = vmul.f32 %v1176, 0.01
        %v1223 = vmul.f32 %v1181, 0.01
        %v1224 = vmul.f32 %v1186, 0.01
        %v1225 = vmul.f32 %v1191, 0.01
        %v1226 = vsel %vm1194, %v1116, %v1210
        %v1227 = vsel %vm1195, %v1121, %v1211
        %v1228 = vsel %vm1196, %v1126, %v1212
        %v1229 = vsel %vm1197, %v1131, %v1213
        %v1230 = vsel %vm1198, %v1136, %v1214
        %v1231 = vsel %vm1199, %v1141, %v1215
        %v1232 = vsel %vm1200, %v1146, %v1216
        %v1233 = vsel %vm1201, %v1151, %v1217
        %v1234 = vsel %vm1202, %v1156, %v1218
        %v1235 = vsel %vm1203, %v1161, %v1219
        %v1236 = vsel %vm1204, %v1166, %v1220
        %v1237 = vsel %vm1205, %v1171, %v1221
        %v1238 = vsel %vm1206, %v1176, %v1222
        %v1239 = vsel %vm1207, %v1181, %v1223
        %v1240 = vsel %vm1208, %v1186, %v1224
        %v1241 = vsel %vm1209, %v1191, %v1225
        %v1242 = vadd.f32 %v957, %v1226
        %v1243 = vadd.f32 %v958, %v1227
        %v1244 = vadd.f32 %v959, %v1228
        %v1245 = vadd.f32 %v960, %v1229
        %v1246 = vadd.f32 %v961, %v1230
        %v1247 = vadd.f32 %v962, %v1231
        %v1248 = vadd.f32 %v963, %v1232
        %v1249 = vadd.f32 %v964, %v1233
        %v1250 = vadd.f32 %v965, %v1234
        %v1251 = vadd.f32 %v966, %v1235
        %v1252 = vadd.f32 %v967, %v1236
        %v1253 = vadd.f32 %v968, %v1237
        %v1254 = vadd.f32 %v969, %v1238
        %v1255 = vadd.f32 %v970, %v1239
        %v1256 = vadd.f32 %v971, %v1240
        %v1257 = vadd.f32 %v972, %v1241
        %1258 = vst.msk [vmem:[%s377] sm:$0xff] %vm1000, %v1242
        %1259 = vst.msk [vmem:[%s377 + $0x8] sm:$0xff] %vm1000, %v1243
        %1260 = vst.msk [vmem:[%s377 + $0x10] sm:$0xff] %vm1000, %v1244
        %1261 = vst.msk [vmem:[%s377 + $0x18] sm:$0xff] %vm1000, %v1245
        %1262 = vst.msk [vmem:[%s377 + $0x20] sm:$0xff] %vm1000, %v1246
        %1263 = vst.msk [vmem:[%s377 + $0x28] sm:$0xff] %vm1000, %v1247
        %1264 = vst.msk [vmem:[%s377 + $0x30] sm:$0xff] %vm1000, %v1248
        %1265 = vst.msk [vmem:[%s377 + $0x38] sm:$0xff] %vm1000, %v1249
        %1266 = vst.msk [vmem:[%s377 + $0x40] sm:$0xff] %vm1000, %v1250
        %1267 = vst.msk [vmem:[%s377 + $0x48] sm:$0xff] %vm1000, %v1251
        %1268 = vst.msk [vmem:[%s377 + $0x50] sm:$0xff] %vm1000, %v1252
        %1269 = vst.msk [vmem:[%s377 + $0x58] sm:$0xff] %vm1000, %v1253
        %1270 = vst.msk [vmem:[%s377 + $0x60] sm:$0xff] %vm1000, %v1254
        %1271 = vst.msk [vmem:[%s377 + $0x68] sm:$0xff] %vm1000, %v1255
        %1272 = vst.msk [vmem:[%s377 + $0x70] sm:$0xff] %vm1000, %v1256
        %1273 = vst.msk [vmem:[%s377 + $0x78] sm:$0xff] %vm1000, %v1257
      $region56: #{aggregator_bi.1} parent=47 // pred_fallthru
        _
      %s1274 = smul.u32 16, %s22
      %p1275 = scmp.lt.s32.totalorder %s1274, 31
      %s1276 = scalar_select %p1275, %s1274, 31
      %s1277 = smul.addr %s1276, 8
      %s1278 = scalar_lea.vmem %s7, %s1277
      // Predicated region
      $region57: #{aggregator_bi.1} parent=47 // pred_check
        %p1279 = pneg %p217
      $region58: #{aggregator_bi.1} parent=47 // pred_check_branch
        %1281 = sbr.rel (%p1279) target = $region60
      $region59: #{aggregator_bi.1} parent=47 // pred_region
        %s1282 = smul.u32 16, %s22
      $region60: #{aggregator_bi.1} parent=47 // pred_fallthru
        _
    $region48: #{aggregator_bi.1} parent=5 // pred_fallthru
      _
    %p1283 = scmp.le.s32.totalorder 2, %s13
    // Predicated region
    $region61: #{aggregator_bi.1} parent=5 // pred_check
      %p1284 = pneg %p1283
    $region62: #{aggregator_bi.1} parent=5 // pred_check_branch
      %1286 = sbr.rel (%p1284) target = $region64
    $region63: #{aggregator_bi.1} parent=5 // pred_region
      %s1287 = ssub.s32 %s13, 2
      // Predicated region
      $region65: #{aggregator_bi.1} parent=63 // pred_check
        %p1288 = pneg %p223
      $region66: #{aggregator_bi.1} parent=63 // pred_check_branch
        %1290 = sbr.rel (%p1288) target = $region68
      $region67: #{aggregator_bi.1} parent=63 // pred_region
        %s1291 = smul.u32 16, %s24
        %p1292 = scmp.lt.s32.totalorder %s1291, 31
        %s1293 = scalar_select %p1292, %s1291, 31
        %s1294 = smul.addr %s1293, 8
        %s1295 = scalar_lea.vmem %s7, %s1294
      $region68: #{aggregator_bi.1} parent=63 // pred_fallthru
        _
    $region64: #{aggregator_bi.1} parent=5 // pred_fallthru
      _
  $region6: #{aggregator_bi.1} parent=0 // loop_footer
    %s17 = sadd.s32 1, %s13
  $region7: #{aggregator_bi.1} parent=0 // loop_footer_branch
    %12 = sbr.rel target = $region3
  $region8: #{aggregator_bi.1} parent=0 // loop_exit
    _

</llo_original>
